<compile_context>
chip_gen: v5e
topology: v5e:2x2
jax: 0.10.0
libtpu: 0.0.40
codegen_flags: <defaults>
</compile_context>

<pallas_src>
import functools
import math

import jax
import jax.numpy as jnp
from jax.experimental import pallas as pl
from jax.experimental.pallas import tpu as pltpu

_VMEM_BUDGET = 24 * 1024 * 1024  # conservative tile-sizing budget (fits all gens)


def _round_up(x, m):
    return ((x + m - 1) // m) * m


def _cdiv(a, b):
    return -(-a // b)


def _linear_kernel(x_ref, w_ref, b_ref, o_ref, acc_ref):
    # x_ref: (tm, tk), w_ref: (tk, tn), b_ref: (1, tn), o_ref: (tm, tn).
    k = pl.program_id(2)

    @pl.when(k == 0)
    def _():
        acc_ref[...] = jnp.zeros_like(acc_ref)

    acc_ref[...] += jnp.dot(x_ref[...], w_ref[...],
                            preferred_element_type=jnp.float32)

    @pl.when(k == pl.num_programs(2) - 1)
    def _():
        o_ref[...] = (acc_ref[...] + b_ref[...].astype(jnp.float32)).astype(o_ref.dtype)


def _choose_tk(D, cap=2048):
    """Reduction tile: full D when it fits, else a 128-multiple divisor of D."""
    if D <= cap:
        return D
    for tk in range(cap, 127, -128):
        if D % tk == 0:
            return tk
    # TODO(synk): no 128-multiple divisor of D <= cap; pad D once at the producer
    # instead of loading the full reduction dim in one block.
    return D


def linear_classifier(features, weight_t, bias2d, num_classes, *, block_m=1024):
    """features: [B, D]; weight_t: [D, Cpad] (pre-transposed, lane-padded);
    bias2d: [1, Cpad]. Returns [B, num_classes] = features @ W^T + b."""
    B, D = features.shape
    Dw, Cpad = weight_t.shape
    assert D == Dw and Cpad % 128 == 0 and bias2d.shape == (1, Cpad)
    assert num_classes <= Cpad

    bx = jnp.dtype(features.dtype).itemsize
    bw = jnp.dtype(weight_t.dtype).itemsize
    bb = jnp.dtype(bias2d.dtype).itemsize
    bo = bx

    # --- tile sizes ---------------------------------------------------------
    tn = min(Cpad, 2048)                         # lane-dense, multiple of 128
    tk = _choose_tk(D)
    grid_n = _cdiv(Cpad, tn)
    grid_k = _cdiv(D, tk)

    w_bufs = 1 if (grid_n == 1 and grid_k == 1) else 2   # single-buffer resident weight
    b_bufs = 1 if grid_n == 1 else 2
    fixed = w_bufs * tk * tn * bw + b_bufs * tn * bb
    per_row = 2 * tk * bx + 2 * tn * bo + tn * 4          # x(x2) + out(x2) + f32 acc
    tm = max((_VMEM_BUDGET - fixed) // per_row, 8)
    tm = min(tm, block_m, _round_up(B, 8))
    if grid_n == 1 and B >= 16:
        # v7x megacore: keep >= 2 batch tiles so both TensorCores get work.
        tm = min(tm, _round_up(_cdiv(B, 2), 8))
    tm = max(8, (tm // 8) * 8)
    grid_b = _cdiv(B, tm)                        # ragged last tile handled by Pallas

    vmem_usage = fixed + tm * per_row
    vmem_limit = int(min(max(32 << 20, vmem_usage + (2 << 20)), 60 << 20))

    # --- specs ---------------------------------------------------------------
    w_kwargs = {"pipeline_mode": pl.Buffered(1)} if w_bufs == 1 else {}
    b_kwargs = {"pipeline_mode": pl.Buffered(1)} if b_bufs == 1 else {}

    in_specs = [
        pl.BlockSpec((tm, tk), lambda i, j, k: (i, k)),               # streamed x
        pl.BlockSpec((tk, tn), lambda i, j, k: (k, j), **w_kwargs),   # weight
        pl.BlockSpec((1, tn), lambda i, j, k: (0, j), **b_kwargs),    # bias
    ]
    out_spec = pl.BlockSpec((tm, tn), lambda i, j, k: (i, j))

    cost = pl.CostEstimate(
        flops=2 * B * D * Cpad,
        transcendentals=0,
        bytes_accessed=B * D * bx + D * Cpad * bw + B * Cpad * bo,
    )

    out = pl.pallas_call(
        _linear_kernel,
        out_shape=jax.ShapeDtypeStruct((B, Cpad), features.dtype),
        grid_spec=pltpu.PrefetchScalarGridSpec(
            num_scalar_prefetch=0,
            grid=(grid_b, grid_n, grid_k),
            in_specs=in_specs,
            out_specs=out_spec,
            scratch_shapes=[pltpu.VMEM((tm, tn), jnp.float32)],
        ),
        compiler_params=pltpu.CompilerParams(
            dimension_semantics=("parallel", "parallel", "arbitrary"),
            vmem_limit_bytes=vmem_limit,
        ),
        cost_estimate=cost,
    )(features, weight_t, bias2d)

    # Under jax.jit this slice fuses into the consumer (padded columns dropped).
    return out[:, :num_classes]


def init_linear_params(key, feat_dim, num_classes, dtype=jnp.float32):
    """nn.Linear default init (uniform +-1/sqrt(fan_in)); weight stored transposed [D, C]."""
    kw, kb = jax.random.split(key)
    bound = 1.0 / math.sqrt(feat_dim)
    weight_t = jax.random.uniform(kw, (feat_dim, num_classes), dtype, -bound, bound)
    bias = jax.random.uniform(kb, (num_classes,), dtype, -bound, bound)
    return weight_t, bias


def prepare_linear_params(weight_t, bias):
    """One-time prep (NOT on the forward path): pad class dim to a lane-dense
    multiple of 128 and keep the padded [D, Cpad] / [1, Cpad] layout in HBM."""
    D, C = weight_t.shape
    Cpad = max(_round_up(C, 128), 128)
    if Cpad != C:
        weight_t = jnp.pad(weight_t, ((0, 0), (0, Cpad - C)))
        bias = jnp.pad(bias, (0, Cpad - C))
    return weight_t, bias.reshape(1, Cpad)


if __name__ == "__main__":
    # Shapes consistent with LinearClassifier.forward: features [B, feat_dim].
    # B=250 is deliberately not a tile multiple -> exercises the ragged-tile path.
    B, feat_dim, num_classes = 250, 128, 10
    key = jax.random.PRNGKey(0)
    k_x, k_p = jax.random.split(key)

    features = jax.random.normal(k_x, (B, feat_dim), jnp.float32)
    weight_t, bias = init_linear_params(k_p, feat_dim, num_classes)
    w_pad, b_pad = prepare_linear_params(weight_t, bias)      # one-time prep

    fwd = jax.jit(linear_classifier, static_argnames=("num_classes", "block_m"))
    out = jax.block_until_ready(fwd(features, w_pad, b_pad, num_classes=num_classes))

    ref = features @ weight_t + bias[None, :]
    assert out.shape == (B, num_classes)
    assert jnp.allclose(out, ref, atol=1e-5, rtol=1e-5)

    # Producer-side bf16 storage path (halves HBM traffic); accumulation stays f32.
    feats_bf = features.astype(jnp.bfloat16)
    w_bf, b_bf = prepare_linear_params(weight_t.astype(jnp.bfloat16),
                                       bias.astype(jnp.bfloat16))
    out_bf = jax.block_until_ready(fwd(feats_bf, w_bf, b_bf, num_classes=num_classes))
    assert out_bf.shape == (B, num_classes)
    assert jnp.allclose(out_bf.astype(jnp.float32), ref, atol=6e-2, rtol=6e-2)

    print("KERNEL_OK")
</pallas_src>

<mosaic_0001>
module attributes {stable_mosaic.version = 11 : i64} {
  func.func @_linear_kernel(%arg0: i32, %arg1: i32, %arg2: i32, %arg3: memref<128x128xf32, #tpu.memory_space<vmem>>, %arg4: memref<128x128xf32, #tpu.memory_space<vmem>>, %arg5: memref<1x128xf32, #tpu.memory_space<vmem>>, %arg6: memref<128x128xf32, #tpu.memory_space<vmem>>, %arg7: memref<128x128xf32, #tpu.memory_space<vmem>>) attributes {dimension_semantics = [#tpu.dimension_semantics<parallel>, #tpu.dimension_semantics<parallel>, #tpu.dimension_semantics<arbitrary>], iteration_bounds = array<i64: 2, 1, 1>, scalar_prefetch = 0 : i64, scratch_operands = 1 : i64, tpu.core_type = #tpu.core_type<tc>, window_params = [{transform_indices = @transform_0, window_bounds = array<i64: 128, 128>}, {pipeline_mode = #tpu.pipeline_mode<synchronous>, transform_indices = @transform_1, window_bounds = array<i64: 128, 128>}, {pipeline_mode = #tpu.pipeline_mode<synchronous>, transform_indices = @transform_2, window_bounds = array<i64: 1, 128>}, {transform_indices = @transform_3, window_bounds = array<i64: 128, 128>}]} {
    %c0_i32 = arith.constant 0 : i32
    %0 = arith.cmpi eq, %arg2, %c0_i32 : i32
    %1 = arith.extui %0 : i1 to i32
    %c0_i32_0 = arith.constant 0 : i32
    %2 = arith.cmpi ne, %1, %c0_i32_0 : i32
    scf.if %2 {
      %cst_10 = arith.constant 0.000000e+00 : f32
      %12 = vector.broadcast %cst_10 : f32 to vector<128x128xf32>
      %c0_11 = arith.constant 0 : index
      %c0_12 = arith.constant 0 : index
      %13 = vector.load %arg7[%c0_11, %c0_12] : memref<128x128xf32, #tpu.memory_space<vmem>>, vector<128x128xf32>
      tpu.vector_store %arg7[%c0_11, %c0_12], %12 {strides = array<i32>} : memref<128x128xf32, #tpu.memory_space<vmem>>, vector<128x128xf32>,
    } else {
    }
    %c0 = arith.constant 0 : index
    %c0_1 = arith.constant 0 : index
    %3 = vector.load %arg7[%c0, %c0_1] : memref<128x128xf32, #tpu.memory_space<vmem>>, vector<128x128xf32>
    %c0_2 = arith.constant 0 : index
    %c0_3 = arith.constant 0 : index
    %4 = vector.load %arg3[%c0_2, %c0_3] : memref<128x128xf32, #tpu.memory_space<vmem>>, vector<128x128xf32>
    %c0_4 = arith.constant 0 : index
    %c0_5 = arith.constant 0 : index
    %5 = vector.load %arg4[%c0_4, %c0_5] : memref<128x128xf32, #tpu.memory_space<vmem>>, vector<128x128xf32>
    %cst = arith.constant dense<0.000000e+00> : vector<128x128xf32>
    %6 = tpu.matmul %4, %5, %cst {dimension_numbers = #tpu.dot_dimension_numbers<[1], [0], [0], [1], [0, 0, 1, 1], [], []>} : vector<128x128xf32>, vector<128x128xf32>, vector<128x128xf32> -> vector<128x128xf32>
    %7 = arith.addf %3, %6 : vector<128x128xf32>
    %c0_6 = arith.constant 0 : index
    %c0_7 = arith.constant 0 : index
    %8 = vector.load %arg7[%c0_6, %c0_7] : memref<128x128xf32, #tpu.memory_space<vmem>>, vector<128x128xf32>
    tpu.vector_store %arg7[%c0_6, %c0_7], %7 {strides = array<i32>} : memref<128x128xf32, #tpu.memory_space<vmem>>, vector<128x128xf32>,
    %c0_i32_8 = arith.constant 0 : i32
    %9 = arith.cmpi eq, %arg2, %c0_i32_8 : i32
    %10 = arith.extui %9 : i1 to i32
    %c0_i32_9 = arith.constant 0 : i32
    %11 = arith.cmpi ne, %10, %c0_i32_9 : i32
    scf.if %11 {
      %c0_10 = arith.constant 0 : index
      %c0_11 = arith.constant 0 : index
      %12 = vector.load %arg7[%c0_10, %c0_11] : memref<128x128xf32, #tpu.memory_space<vmem>>, vector<128x128xf32>
      %c0_12 = arith.constant 0 : index
      %c0_13 = arith.constant 0 : index
      %13 = vector.load %arg5[%c0_12, %c0_13] : memref<1x128xf32, #tpu.memory_space<vmem>>, vector<1x128xf32>
      %14 = vector.broadcast %13 : vector<1x128xf32> to vector<128x128xf32>
      %15 = arith.addf %12, %14 : vector<128x128xf32>
      %c0_14 = arith.constant 0 : index
      %c0_15 = arith.constant 0 : index
      %16 = vector.load %arg6[%c0_14, %c0_15] : memref<128x128xf32, #tpu.memory_space<vmem>>, vector<128x128xf32>
      tpu.vector_store %arg6[%c0_14, %c0_15], %15 {strides = array<i32>} : memref<128x128xf32, #tpu.memory_space<vmem>>, vector<128x128xf32>,
    } else {
    }
    return
  }
  func.func @transform_0(%arg0: i32, %arg1: i32, %arg2: i32) -> (i32, i32) {
    %c0_i32 = arith.constant 0 : i32
    return %arg0, %arg2 : i32, i32
  }
  func.func @transform_1(%arg0: i32, %arg1: i32, %arg2: i32) -> (i32, i32) {
    %c0_i32 = arith.constant 0 : i32
    return %arg2, %arg1 : i32, i32
  }
  func.func @transform_2(%arg0: i32, %arg1: i32, %arg2: i32) -> (i32, i32) {
    %c0_i32 = arith.constant 0 : i32
    %c0_i32_0 = arith.constant 0 : i32
    return %c0_i32, %arg1 : i32, i32
  }
  func.func @transform_3(%arg0: i32, %arg1: i32, %arg2: i32) -> (i32, i32) {
    %c0_i32 = arith.constant 0 : i32
    return %arg0, %arg1 : i32, i32
  }
}

</mosaic_0001>

<llo_original>
// kernel: linear_classifier.1
$region0: #{linear_classifier.1}
  #allocation0 [shape = 'u32[]', space=smem, size = 0x4, offset = 0x4, fixed_abs, tag = 'smem constant byte address 0x4 - core index']
  #allocation1 [shape = 'u32[72,128]{1,0:T(1,128)}', space=vmem, size = 0x9000, scoped, tag = 'internal scratch']
  #allocation2 [shape = 'f32[128,128]{1,0:T(8,128)}', space=vmem, size = 0x10000, scoped, tag = 'scratch operand']
  %s0 = inlined_call_operand.hbm [shape: f32[250,128], index: 0, kind: input, shape index: {}]
  %s1 = inlined_call_operand.hbm [shape: f32[128,128], index: 1, kind: input, shape index: {}]
  %s2 = inlined_call_operand.vmem [shape: f32[1,128], index: 2, kind: input, shape index: {}]
  %s3 = inlined_call_operand.vmem [shape: f32[250,128], index: 3, kind: output, shape index: {}]
  %s4 = sld [smem:[#allocation0]]
  $region61: #{linear_classifier.1} parent=0
    _
  %s6 = ssub.s32 1, %s4
  %s7 = scalar_select 0, %s6, %s4
  $region1: #{linear_classifier.1} parent=0
    #allocation3 [shape = 'u8[131072]{0}', space=vmem, size = 0x20000, scoped, tag = 'input window, operand 0']
    #allocation4 [shape = 's32[2]{0}', space=sflag, size = 0x8, scoped, tag = 'scoped memory for linear_classifier.1']
    #allocation5 [shape = 'u8[65536]{0}', space=vmem, size = 0x10000, scoped, tag = 'input window, operand 1, single buffered']
    #allocation6 [shape = 's32[1]{0}', space=sflag, size = 0x4, scoped, tag = 'scoped memory for linear_classifier.1']
    %8 = vsyncpa [#allocation4], 0
    %s9 = scalar_lea.sflag [#allocation4], 1
    %10 = vsyncpa %s9, 0
    %11 = vsyncpa [#allocation6], 0
    loop: start=0, step=1, limit=4
    $region2: #{linear_classifier.1} parent=1 // loop_pre_header
      _
    $region3: #{linear_classifier.1} parent=1 // loop_header
      %s13 = sphi 0, %s17
      %p14 = scmp.ge.s32.totalorder %s13, 4
      %s20 = sphi 0, %s39
      %s21 = sphi 0, %s35
      %s22 = sphi 0, %s31
      %s23 = sphi 0, %s20
      %s24 = sphi 0, %s21
      %s25 = sphi 0, %s22
      %s26 = sphi 0, %s23
      %s27 = sphi 0, %s24
      %s28 = sphi 0, %s25
      %s44 = sphi 0, %s46
      %s47 = sphi 0, %s44
      %s48 = sphi 0, %s47
      %s64 = sphi 0, %s48
      %s72 = sphi 0, %s74
      %s75 = sphi 0, %s72
      %s76 = sphi 0, %s75
      %s92 = sphi 0, %s76
      %s98 = sphi 0, %s100
      %s101 = sphi 0, %s98
      %s102 = sphi 0, %s101
      %s118 = sphi 0, %s102
      %s126 = sphi 0, %s128
      %s129 = sphi 0, %s126
      %s130 = sphi 0, %s129
      %s146 = sphi 0, %s130
    $region4: #{linear_classifier.1} parent=1 // loop_header_branch
      %16 = sbr.rel (%p14) target = $region8
    $region5: #{linear_classifier.1} parent=1 // loop_body
      %s18 = ssub.s32 %s13, 1
      %s19 = ssub.s32 %s13, 2
      %s29 = sadd.s32 1, %s22
      %p30 = scmp.ge.s32.totalorder %s29, 1
      %s31 = scalar_select %p30, 0, %s29
      %s32 = sadd.s32 1, %s21
      %s33 = scalar_select %p30, %s32, %s21
      %p34 = scmp.ge.s32.totalorder %s33, 1
      %s35 = scalar_select %p34, 0, %s33
      %s36 = sadd.s32 1, %s20
      %s37 = scalar_select %p34, %s36, %s20
      %p38 = scmp.ge.s32.totalorder %s37, 2
      %s39 = scalar_select %p38, 0, %s37
      %s40 = ssub.s32 %s20, %s39
      %s41 = ssub.s32 %s22, %s31
      %s42 = sor.u32 %s40, %s41
      %p43 = scmp.eq.s32.totalorder %s42, 0
      %s45 = sadd.s32 %s44, 1
      %s46 = scalar_select %p43, %s44, %s45
      %p49 = pneg %p43
      %p50 = scmp.eq.s32.totalorder %s13, 1
      %p51 = por %p49, %p50
      %p52 = scmp.ne.s32.totalorder %s44, %s47
      %p53 = scmp.eq.s32.totalorder %s13, 0
      %p54 = por %p52, %p53
      %p55 = scmp.ne.s32.totalorder %s44, %s47
      %p56 = scmp.eq.s32.totalorder %s18, 1
      %p57 = por %p55, %p56
      %p58 = scmp.ne.s32.totalorder %s47, %s48
      %p59 = scmp.eq.s32.totalorder %s18, 0
      %p60 = por %p58, %p59
      %p61 = scmp.ne.s32.totalorder %s47, %s48
      %p62 = scmp.eq.s32.totalorder %s19, 1
      %p63 = por %p61, %p62
      %p65 = scmp.ne.s32.totalorder %s48, %s64
      %p66 = scmp.eq.s32.totalorder %s19, 0
      %p67 = por %p65, %p66
      %s68 = ssub.s32 %s22, %s31
      %s69 = ssub.s32 %s21, %s35
      %s70 = sor.u32 %s68, %s69
      %p71 = scmp.eq.s32.totalorder %s70, 0
      %s73 = sadd.s32 %s72, 1
      %s74 = scalar_select %p71, %s72, %s73
      %p77 = pneg %p71
      %p78 = scmp.eq.s32.totalorder %s13, 1
      %p79 = por %p77, %p78
      %p80 = scmp.ne.s32.totalorder %s72, %s75
      %p81 = scmp.eq.s32.totalorder %s13, 0
      %p82 = por %p80, %p81
      %p83 = scmp.ne.s32.totalorder %s72, %s75
      %p84 = scmp.eq.s32.totalorder %s18, 1
      %p85 = por %p83, %p84
      %p86 = scmp.ne.s32.totalorder %s75, %s76
      %p87 = scmp.eq.s32.totalorder %s18, 0
      %p88 = por %p86, %p87
      %p89 = scmp.ne.s32.totalorder %s75, %s76
      %p90 = scmp.eq.s32.totalorder %s19, 1
      %p91 = por %p89, %p90
      %p93 = scmp.ne.s32.totalorder %s76, %s92
      %p94 = scmp.eq.s32.totalorder %s19, 0
      %p95 = por %p93, %p94
      %s96 = ssub.s32 %s21, %s35
      %p97 = scmp.eq.s32.totalorder %s96, 0
      %s99 = sadd.s32 %s98, 1
      %s100 = scalar_select %p97, %s98, %s99
      %p103 = pneg %p97
      %p104 = scmp.eq.s32.totalorder %s13, 1
      %p105 = por %p103, %p104
      %p106 = scmp.ne.s32.totalorder %s98, %s101
      %p107 = scmp.eq.s32.totalorder %s13, 0
      %p108 = por %p106, %p107
      %p109 = scmp.ne.s32.totalorder %s98, %s101
      %p110 = scmp.eq.s32.totalorder %s18, 1
      %p111 = por %p109, %p110
      %p112 = scmp.ne.s32.totalorder %s101, %s102
      %p113 = scmp.eq.s32.totalorder %s18, 0
      %p114 = por %p112, %p113
      %p115 = scmp.ne.s32.totalorder %s101, %s102
      %p116 = scmp.eq.s32.totalorder %s19, 1
      %p117 = por %p115, %p116
      %p119 = scmp.ne.s32.totalorder %s102, %s118
      %p120 = scmp.eq.s32.totalorder %s19, 0
      %p121 = por %p119, %p120
      %s122 = ssub.s32 %s20, %s39
      %s123 = ssub.s32 %s21, %s35
      %s124 = sor.u32 %s122, %s123
      %p125 = scmp.eq.s32.totalorder %s124, 0
      %s127 = sadd.s32 %s126, 1
      %s128 = scalar_select %p125, %s126, %s127
      %p131 = pneg %p125
      %p132 = scmp.eq.s32.totalorder %s13, 1
      %p133 = por %p131, %p132
      %p134 = scmp.ne.s32.totalorder %s126, %s129
      %p135 = scmp.eq.s32.totalorder %s13, 0
      %p136 = por %p134, %p135
      %p137 = scmp.ne.s32.totalorder %s126, %s129
      %p138 = scmp.eq.s32.totalorder %s18, 1
      %p139 = por %p137, %p138
      %p140 = scmp.ne.s32.totalorder %s129, %s130
      %p141 = scmp.eq.s32.totalorder %s18, 0
      %p142 = por %p140, %p141
      %p143 = scmp.ne.s32.totalorder %s129, %s130
      %p144 = scmp.eq.s32.totalorder %s19, 1
      %p145 = por %p143, %p144
      %p147 = scmp.ne.s32.totalorder %s130, %s146
      %p148 = scmp.eq.s32.totalorder %s19, 0
      %p149 = por %p147, %p148
      %p150 = scmp.le.s32.totalorder 1, %s13
      %p151 = scmp.lt.s32.totalorder %s13, 3
      %p152 = pnand %p150, %p151
      %p153 = pneg %p152
      // Predicated region
      $region9: #{linear_classifier.1} parent=5 // pred_check
        _
      $region10: #{linear_classifier.1} parent=5 // pred_check_branch
        %155 = sbr.rel (%p152) target = $region12
      $region11: #{linear_classifier.1} parent=5 // pred_region
        %s156 = ssub.s32 %s13, 1
        // Predicated region
        $region13: #{linear_classifier.1} parent=11 // pred_check
          %p157 = pneg %p88
        $region14: #{linear_classifier.1} parent=11 // pred_check_branch
          %159 = sbr.rel (%p157) target = $region16
        $region15: #{linear_classifier.1} parent=11 // pred_region
          %s160 = smul.u32 16, %s25
          %162 = vsyncadd [#allocation6], 0
          %s163 = sadd.s32 %s24, %s160
          %s164 = smul.addr %s163, 8
          %s165 = scalar_lea.hbm %s1, %s164
          %s166 = sshll.u32 %s165, 4
          %s167 = int_to_ptr.hbm [resolvable:$true] %s166
          %s168 = sshll.u32 [#allocation5], 4
          %s169 = int_to_ptr.vmem [resolvable:$true] %s168
          %174 = dma.hbm_to_vmem [thread:$0]  %s167, 2048, %s169, [#allocation6], 128, 128, 8
        $region16: #{linear_classifier.1} parent=11 // pred_fallthru
          _
        // Predicated region
        $region17: #{linear_classifier.1} parent=11 // pred_check
          %p175 = pneg %p114
        $region18: #{linear_classifier.1} parent=11 // pred_check_branch
          %177 = sbr.rel (%p175) target = $region20
        $region19: #{linear_classifier.1} parent=11 // pred_region
          %p178 = scmp.lt.s32.totalorder %s24, 0
          %s179 = scalar_select %p178, %s24, 0
          %s180 = scalar_lea.vmem %s2, %s179
        $region20: #{linear_classifier.1} parent=11 // pred_fallthru
          _
      $region12: #{linear_classifier.1} parent=5 // pred_fallthru
        _
      %p181 = scmp.lt.s32.totalorder %s13, 2
      // Predicated region
      $region21: #{linear_classifier.1} parent=5 // pred_check
        %p182 = pneg %p181
      $region22: #{linear_classifier.1} parent=5 // pred_check_branch
        %184 = sbr.rel (%p182) target = $region24
      $region23: #{linear_classifier.1} parent=5 // pred_region
        // Predicated region
        $region25: #{linear_classifier.1} parent=23 // pred_check
          %p185 = pneg %p54
        $region26: #{linear_classifier.1} parent=23 // pred_check_branch
          %187 = sbr.rel (%p185) target = $region28
        $region27: #{linear_classifier.1} parent=23 // pred_region
          %s188 = sand.u32 %s44, 1
          %s189 = scalar_lea.sflag [#allocation4], %s188
          %s190 = sand.u32 %s44, 1
          %s191 = smul.addr %s190, 128
          %s192 = scalar_lea.vmem [#allocation3], %s191
          %s193 = smul.u32 16, %s20
          %195 = vsyncadd %s189, 0
          %s196 = sadd.s32 %s22, %s193
          %s197 = smul.addr %s196, 8
          %s198 = scalar_lea.hbm %s0, %s197
          %s199 = sshll.u32 %s198, 4
          %s200 = int_to_ptr.hbm [resolvable:$true] %s199
          %s201 = sshll.u32 %s192, 4
          %s202 = int_to_ptr.vmem [resolvable:$true] %s201
          %207 = dma.hbm_to_vmem [thread:$0]  %s200, 2048, %s202, %s189, 128, 128, 8
        $region28: #{linear_classifier.1} parent=23 // pred_fallthru
          _
      $region24: #{linear_classifier.1} parent=5 // pred_fallthru
        _
      %p208 = scmp.le.s32.totalorder 1, %s13
      %p209 = scmp.lt.s32.totalorder %s13, 3
      %p210 = pnand %p208, %p209
      %p211 = pneg %p210
      // Predicated region
      $region29: #{linear_classifier.1} parent=5 // pred_check
        _
      $region30: #{linear_classifier.1} parent=5 // pred_check_branch
        %213 = sbr.rel (%p210) target = $region32
      $region31: #{linear_classifier.1} parent=5 // pred_region
        %s214 = ssub.s32 %s13, 1
        %s215 = sand.u32 %s47, 1
        %s216 = scalar_lea.sflag [#allocation4], %s215
        %s217 = sand.u32 %s47, 1
        %s218 = smul.addr %s217, 128
        %s219 = scalar_lea.vmem [#allocation3], %s218
        // Predicated region
        $region33: #{linear_classifier.1} parent=31 // pred_check
          %p220 = pneg %p60
        $region34: #{linear_classifier.1} parent=31 // pred_check_branch
          %222 = sbr.rel (%p220) target = $region36
        $region35: #{linear_classifier.1} parent=31 // pred_region
          %224 = dma.done %s216, 2048
        $region36: #{linear_classifier.1} parent=31 // pred_fallthru
          _
        // Predicated region
        $region37: #{linear_classifier.1} parent=31 // pred_check
          %p225 = pneg %p88
        $region38: #{linear_classifier.1} parent=31 // pred_check_branch
          %227 = sbr.rel (%p225) target = $region40
        $region39: #{linear_classifier.1} parent=31 // pred_region
          %229 = dma.done [#allocation6], 2048
        $region40: #{linear_classifier.1} parent=31 // pred_fallthru
          _
        %s230 = sand.u32 %s47, 1
        %s231 = scalar_lea.sflag [#allocation4], %s230
        %s232 = sand.u32 %s47, 1
        %s233 = smul.addr %s232, 128
        %s234 = scalar_lea.vmem [#allocation3], %s233
        %p235 = pneg %p60
        %p236 = pneg %p57
        %p237 = pneg %p88
        %p238 = pneg %p85
        %p239 = scmp.lt.s32.totalorder %s24, 0
        %s240 = scalar_select %p239, %s24, 0
        %s241 = scalar_lea.vmem %s2, %s240
        %p242 = pneg %p114
        %p243 = pneg %p111
        %p244 = pneg %p142
        %p245 = pneg %p139
        %s246 = smul.u32 16, %s23
        %p247 = scmp.lt.s32.totalorder %s246, 31
        %s248 = scalar_select %p247, %s246, 31
        %p249 = scmp.lt.s32.totalorder %s24, 0
        %s250 = scalar_select %p249, %s24, 0
        %s251 = sadd.s32 %s250, %s248
        %s252 = smul.addr %s251, 8
        %s253 = scalar_lea.vmem %s3, %s252
        %s254 = smul.u32 16, %s23
        %s255 = smul.u32 16, %s25
        %p256 = scmp.lt.s32.totalorder %s24, 0
        %s257 = scalar_select %p256, %s24, 0
        %s258 = scalar_lea.vmem %s2, %s257
        %s259 = smul.u32 16, %s23
        %p260 = scmp.lt.s32.totalorder %s259, 31
        %s261 = scalar_select %p260, %s259, 31
        %p262 = scmp.lt.s32.totalorder %s24, 0
        %s263 = scalar_select %p262, %s24, 0
        %s264 = sadd.s32 %s263, %s261
        %s265 = smul.addr %s264, 8
        %s266 = scalar_lea.vmem %s3, %s265
        %s267 = smul.u32 16, %s23
        %p268 = scmp.eq.s32.totalorder %s25, 0
        // Predicated region
        $region41: #{linear_classifier.1} parent=31 // pred_check
          %p269 = pneg %p268
        $region42: #{linear_classifier.1} parent=31 // pred_check_branch
          %271 = sbr.rel (%p269) target = $region44
        $region43: #{linear_classifier.1} parent=31 // pred_region
          %272 = vst [vmem:[#allocation2] sm:$0xff] 0.0
          %273 = vst [vmem:[#allocation2 + $0x8] sm:$0xff] 0.0
          %274 = vst [vmem:[#allocation2 + $0x10] sm:$0xff] 0.0
          %275 = vst [vmem:[#allocation2 + $0x18] sm:$0xff] 0.0
          %276 = vst [vmem:[#allocation2 + $0x20] sm:$0xff] 0.0
          %277 = vst [vmem:[#allocation2 + $0x28] sm:$0xff] 0.0
          %278 = vst [vmem:[#allocation2 + $0x30] sm:$0xff] 0.0
          %279 = vst [vmem:[#allocation2 + $0x38] sm:$0xff] 0.0
          %280 = vst [vmem:[#allocation2 + $0x40] sm:$0xff] 0.0
          %281 = vst [vmem:[#allocation2 + $0x48] sm:$0xff] 0.0
          %282 = vst [vmem:[#allocation2 + $0x50] sm:$0xff] 0.0
          %283 = vst [vmem:[#allocation2 + $0x58] sm:$0xff] 0.0
          %284 = vst [vmem:[#allocation2 + $0x60] sm:$0xff] 0.0
          %285 = vst [vmem:[#allocation2 + $0x68] sm:$0xff] 0.0
          %286 = vst [vmem:[#allocation2 + $0x70] sm:$0xff] 0.0
          %287 = vst [vmem:[#allocation2 + $0x78] sm:$0xff] 0.0
        $region44: #{linear_classifier.1} parent=31 // pred_fallthru
          _
        %v288 = vld [vmem:[#allocation2] sm:$0xff]
        %v289 = vld [vmem:[#allocation2 + $0x8] sm:$0xff]
        %v290 = vld [vmem:[#allocation2 + $0x10] sm:$0xff]
        %v291 = vld [vmem:[#allocation2 + $0x18] sm:$0xff]
        %v292 = vld [vmem:[#allocation2 + $0x20] sm:$0xff]
        %v293 = vld [vmem:[#allocation2 + $0x28] sm:$0xff]
        %v294 = vld [vmem:[#allocation2 + $0x30] sm:$0xff]
        %v295 = vld [vmem:[#allocation2 + $0x38] sm:$0xff]
        %v296 = vld [vmem:[#allocation2 + $0x40] sm:$0xff]
        %v297 = vld [vmem:[#allocation2 + $0x48] sm:$0xff]
        %v298 = vld [vmem:[#allocation2 + $0x50] sm:$0xff]
        %v299 = vld [vmem:[#allocation2 + $0x58] sm:$0xff]
        %v300 = vld [vmem:[#allocation2 + $0x60] sm:$0xff]
        %v301 = vld [vmem:[#allocation2 + $0x68] sm:$0xff]
        %v302 = vld [vmem:[#allocation2 + $0x70] sm:$0xff]
        %v303 = vld [vmem:[#allocation2 + $0x78] sm:$0xff]
        %v304 = vld [vmem:[%s219] sm:$0xff]
        %v305 = vld [vmem:[%s219 + $0x8] sm:$0xff]
        %v306 = vld [vmem:[%s219 + $0x10] sm:$0xff]
        %v307 = vld [vmem:[%s219 + $0x18] sm:$0xff]
        %v308 = vld [vmem:[%s219 + $0x20] sm:$0xff]
        %v309 = vld [vmem:[%s219 + $0x28] sm:$0xff]
        %v310 = vld [vmem:[%s219 + $0x30] sm:$0xff]
        %v311 = vld [vmem:[%s219 + $0x38] sm:$0xff]
        %v312 = vld [vmem:[%s219 + $0x40] sm:$0xff]
        %v313 = vld [vmem:[%s219 + $0x48] sm:$0xff]
        %v314 = vld [vmem:[%s219 + $0x50] sm:$0xff]
        %v315 = vld [vmem:[%s219 + $0x58] sm:$0xff]
        %v316 = vld [vmem:[%s219 + $0x60] sm:$0xff]
        %v317 = vld [vmem:[%s219 + $0x68] sm:$0xff]
        %v318 = vld [vmem:[%s219 + $0x70] sm:$0xff]
        %v319 = vld [vmem:[%s219 + $0x78] sm:$0xff]
        %v320 = vld [vmem:[#allocation5] sm:$0xff]
        %v321 = vld [vmem:[#allocation5 + $0x8] sm:$0xff]
        %v322 = vld [vmem:[#allocation5 + $0x10] sm:$0xff]
        %v323 = vld [vmem:[#allocation5 + $0x18] sm:$0xff]
        %v324 = vld [vmem:[#allocation5 + $0x20] sm:$0xff]
        %v325 = vld [vmem:[#allocation5 + $0x28] sm:$0xff]
        %v326 = vld [vmem:[#allocation5 + $0x30] sm:$0xff]
        %v327 = vld [vmem:[#allocation5 + $0x38] sm:$0xff]
        %v328 = vld [vmem:[#allocation5 + $0x40] sm:$0xff]
        %v329 = vld [vmem:[#allocation5 + $0x48] sm:$0xff]
        %v330 = vld [vmem:[#allocation5 + $0x50] sm:$0xff]
        %v331 = vld [vmem:[#allocation5 + $0x58] sm:$0xff]
        %v332 = vld [vmem:[#allocation5 + $0x60] sm:$0xff]
        %v333 = vld [vmem:[#allocation5 + $0x68] sm:$0xff]
        %v334 = vld [vmem:[#allocation5 + $0x70] sm:$0xff]
        %v335 = vld [vmem:[#allocation5 + $0x78] sm:$0xff]
        %336 = vmatpush.msra.mxu0 %v335
        %337 = vmatpush.msra.mxu0 %v334
        %338 = vmatpush.msra.mxu0 %v333
        %339 = vmatpush.msra.mxu0 %v332
        %340 = vmatpush.msra.mxu0 %v331
        %341 = vmatpush.msra.mxu0 %v330
        %342 = vmatpush.msra.mxu0 %v329
        %343 = vmatpush.msra.mxu0 %v328
        %344 = vmatpush.msra.mxu0 %v327
        %345 = vmatpush.msra.mxu0 %v326
        %346 = vmatpush.msra.mxu0 %v325
        %347 = vmatpush.msra.mxu0 %v324
        %348 = vmatpush.msra.mxu0 %v323
        %349 = vmatpush.msra.mxu0 %v322
        %350 = vmatpush.msra.mxu0 %v321
        %351 = vmatpush.msra.mxu0 %v320
        %352 = vmatmul.f32.gmra.mxu0 %v304
        %v353 = vpop.f32.mrf.mxu0
        %v354 = vadd.f32 0.0, %v353
        %355 = vmatmul.f32.gmra.mxu0 %v305
        %v356 = vpop.f32.mrf.mxu0
        %v357 = vadd.f32 0.0, %v356
        %358 = vmatmul.f32.gmra.mxu0 %v306
        %v359 = vpop.f32.mrf.mxu0
        %v360 = vadd.f32 0.0, %v359
        %361 = vmatmul.f32.gmra.mxu0 %v307
        %v362 = vpop.f32.mrf.mxu0
        %v363 = vadd.f32 0.0, %v362
        %364 = vmatmul.f32.gmra.mxu0 %v308
        %v365 = vpop.f32.mrf.mxu0
        %v366 = vadd.f32 0.0, %v365
        %367 = vmatmul.f32.gmra.mxu0 %v309
        %v368 = vpop.f32.mrf.mxu0
        %v369 = vadd.f32 0.0, %v368
        %370 = vmatmul.f32.gmra.mxu0 %v310
        %v371 = vpop.f32.mrf.mxu0
        %v372 = vadd.f32 0.0, %v371
        %373 = vmatmul.f32.gmra.mxu0 %v311
        %v374 = vpop.f32.mrf.mxu0
        %v375 = vadd.f32 0.0, %v374
        %376 = vmatmul.f32.gmra.mxu0 %v312
        %v377 = vpop.f32.mrf.mxu0
        %v378 = vadd.f32 0.0, %v377
        %379 = vmatmul.f32.gmra.mxu0 %v313
        %v380 = vpop.f32.mrf.mxu0
        %v381 = vadd.f32 0.0, %v380
        %382 = vmatmul.f32.gmra.mxu0 %v314
        %v383 = vpop.f32.mrf.mxu0
        %v384 = vadd.f32 0.0, %v383
        %385 = vmatmul.f32.gmra.mxu0 %v315
        %v386 = vpop.f32.mrf.mxu0
        %v387 = vadd.f32 0.0, %v386
        %388 = vmatmul.f32.gmra.mxu0 %v316
        %v389 = vpop.f32.mrf.mxu0
        %v390 = vadd.f32 0.0, %v389
        %391 = vmatmul.f32.gmra.mxu0 %v317
        %v392 = vpop.f32.mrf.mxu0
        %v393 = vadd.f32 0.0, %v392
        %394 = vmatmul.f32.gmra.mxu0 %v318
        %v395 = vpop.f32.mrf.mxu0
        %v396 = vadd.f32 0.0, %v395
        %397 = vmatmul.f32.gmra.mxu0 %v319
        %v398 = vpop.f32.mrf.mxu0
        %v399 = vadd.f32 0.0, %v398
        %400 = vdwg.mxu0
        %v401 = vadd.f32 %v288, %v354
        %v402 = vadd.f32 %v289, %v357
        %v403 = vadd.f32 %v290, %v360
        %v404 = vadd.f32 %v291, %v363
        %v405 = vadd.f32 %v292, %v366
        %v406 = vadd.f32 %v293, %v369
        %v407 = vadd.f32 %v294, %v372
        %v408 = vadd.f32 %v295, %v375
        %v409 = vadd.f32 %v296, %v378
        %v410 = vadd.f32 %v297, %v381
        %v411 = vadd.f32 %v298, %v384
        %v412 = vadd.f32 %v299, %v387
        %v413 = vadd.f32 %v300, %v390
        %v414 = vadd.f32 %v301, %v393
        %v415 = vadd.f32 %v302, %v396
        %v416 = vadd.f32 %v303, %v399
        %417 = vst [vmem:[#allocation2] sm:$0xff] %v401
        %418 = vst [vmem:[#allocation2 + $0x8] sm:$0xff] %v402
        %419 = vst [vmem:[#allocation2 + $0x10] sm:$0xff] %v403
        %420 = vst [vmem:[#allocation2 + $0x18] sm:$0xff] %v404
        %421 = vst [vmem:[#allocation2 + $0x20] sm:$0xff] %v405
        %422 = vst [vmem:[#allocation2 + $0x28] sm:$0xff] %v406
        %423 = vst [vmem:[#allocation2 + $0x30] sm:$0xff] %v407
        %424 = vst [vmem:[#allocation2 + $0x38] sm:$0xff] %v408
        %425 = vst [vmem:[#allocation2 + $0x40] sm:$0xff] %v409
        %426 = vst [vmem:[#allocation2 + $0x48] sm:$0xff] %v410
        %427 = vst [vmem:[#allocation2 + $0x50] sm:$0xff] %v411
        %428 = vst [vmem:[#allocation2 + $0x58] sm:$0xff] %v412
        %429 = vst [vmem:[#allocation2 + $0x60] sm:$0xff] %v413
        %430 = vst [vmem:[#allocation2 + $0x68] sm:$0xff] %v414
        %431 = vst [vmem:[#allocation2 + $0x70] sm:$0xff] %v415
        %432 = vst [vmem:[#allocation2 + $0x78] sm:$0xff] %v416
        // Predicated region
        $region45: #{linear_classifier.1} parent=31 // pred_check
          %p433 = pneg %p268
        $region46: #{linear_classifier.1} parent=31 // pred_check_branch
          %435 = sbr.rel (%p433) target = $region48
        $region47: #{linear_classifier.1} parent=31 // pred_region
          %v436 = vld [vmem:[#allocation2] sm:$0xff]
          %v437 = vld [vmem:[#allocation2 + $0x8] sm:$0xff]
          %v438 = vld [vmem:[#allocation2 + $0x10] sm:$0xff]
          %v439 = vld [vmem:[#allocation2 + $0x18] sm:$0xff]
          %v440 = vld [vmem:[#allocation2 + $0x20] sm:$0xff]
          %v441 = vld [vmem:[#allocation2 + $0x28] sm:$0xff]
          %v442 = vld [vmem:[#allocation2 + $0x30] sm:$0xff]
          %v443 = vld [vmem:[#allocation2 + $0x38] sm:$0xff]
          %v444 = vld [vmem:[#allocation2 + $0x40] sm:$0xff]
          %v445 = vld [vmem:[#allocation2 + $0x48] sm:$0xff]
          %v446 = vld [vmem:[#allocation2 + $0x50] sm:$0xff]
          %v447 = vld [vmem:[#allocation2 + $0x58] sm:$0xff]
          %v448 = vld [vmem:[#allocation2 + $0x60] sm:$0xff]
          %v449 = vld [vmem:[#allocation2 + $0x68] sm:$0xff]
          %v450 = vld [vmem:[#allocation2 + $0x70] sm:$0xff]
          %v451 = vld [vmem:[#allocation2 + $0x78] sm:$0xff]
          %v452 = vld [vmem:[%s258] sm:$0x1]
          %v454 = vperm.slane %v452, 0
          %v456 = vadd.f32 %v436, %v454
          %v457 = vadd.f32 %v437, %v454
          %v458 = vadd.f32 %v438, %v454
          %v459 = vadd.f32 %v439, %v454
          %v460 = vadd.f32 %v440, %v454
          %v461 = vadd.f32 %v441, %v454
          %v462 = vadd.f32 %v442, %v454
          %v463 = vadd.f32 %v443, %v454
          %v464 = vadd.f32 %v444, %v454
          %v465 = vadd.f32 %v445, %v454
          %v466 = vadd.f32 %v446, %v454
          %v467 = vadd.f32 %v447, %v454
          %v468 = vadd.f32 %v448, %v454
          %v469 = vadd.f32 %v449, %v454
          %v470 = vadd.f32 %v450, %v454
          %v471 = vadd.f32 %v451, %v454
          %472 = vst [vmem:[%s266] sm:$0xff] %v456
          %473 = vst [vmem:[%s266 + $0x8] sm:$0xff] %v457
          %474 = vst [vmem:[%s266 + $0x10] sm:$0xff] %v458
          %475 = vst [vmem:[%s266 + $0x18] sm:$0xff] %v459
          %476 = vst [vmem:[%s266 + $0x20] sm:$0xff] %v460
          %477 = vst [vmem:[%s266 + $0x28] sm:$0xff] %v461
          %478 = vst [vmem:[%s266 + $0x30] sm:$0xff] %v462
          %479 = vst [vmem:[%s266 + $0x38] sm:$0xff] %v463
          %480 = vst [vmem:[%s266 + $0x40] sm:$0xff] %v464
          %481 = vst [vmem:[%s266 + $0x48] sm:$0xff] %v465
          %482 = vst [vmem:[%s266 + $0x50] sm:$0xff] %v466
          %483 = vst [vmem:[%s266 + $0x58] sm:$0xff] %v467
          %484 = vst [vmem:[%s266 + $0x60] sm:$0xff] %v468
          %485 = vst [vmem:[%s266 + $0x68] sm:$0xff] %v469
          %486 = vst [vmem:[%s266 + $0x70] sm:$0xff] %v470
          %487 = vst [vmem:[%s266 + $0x78] sm:$0xff] %v471
        $region48: #{linear_classifier.1} parent=31 // pred_fallthru
          _
        %s488 = smul.u32 16, %s23
        %p489 = scmp.lt.s32.totalorder %s488, 31
        %s490 = scalar_select %p489, %s488, 31
        %p491 = scmp.lt.s32.totalorder %s24, 0
        %s492 = scalar_select %p491, %s24, 0
        %s493 = sadd.s32 %s492, %s490
        %s494 = smul.addr %s493, 8
        %s495 = scalar_lea.vmem %s3, %s494
        // Predicated region
        $region49: #{linear_classifier.1} parent=31 // pred_check
          %p496 = pneg %p139
        $region50: #{linear_classifier.1} parent=31 // pred_check_branch
          %498 = sbr.rel (%p496) target = $region52
        $region51: #{linear_classifier.1} parent=31 // pred_region
          %s499 = smul.u32 16, %s23
        $region52: #{linear_classifier.1} parent=31 // pred_fallthru
          _
      $region32: #{linear_classifier.1} parent=5 // pred_fallthru
        _
      %p500 = scmp.le.s32.totalorder 2, %s13
      // Predicated region
      $region53: #{linear_classifier.1} parent=5 // pred_check
        %p501 = pneg %p500
      $region54: #{linear_classifier.1} parent=5 // pred_check_branch
        %503 = sbr.rel (%p501) target = $region56
      $region55: #{linear_classifier.1} parent=5 // pred_region
        %s504 = ssub.s32 %s13, 2
        // Predicated region
        $region57: #{linear_classifier.1} parent=55 // pred_check
          %p505 = pneg %p145
        $region58: #{linear_classifier.1} parent=55 // pred_check_branch
          %507 = sbr.rel (%p505) target = $region60
        $region59: #{linear_classifier.1} parent=55 // pred_region
          %s508 = smul.u32 16, %s26
          %p509 = scmp.lt.s32.totalorder %s508, 31
          %s510 = scalar_select %p509, %s508, 31
          %p511 = scmp.lt.s32.totalorder %s27, 0
          %s512 = scalar_select %p511, %s27, 0
          %s513 = sadd.s32 %s512, %s510
          %s514 = smul.addr %s513, 8
          %s515 = scalar_lea.vmem %s3, %s514
        $region60: #{linear_classifier.1} parent=55 // pred_fallthru
          _
      $region56: #{linear_classifier.1} parent=5 // pred_fallthru
        _
    $region6: #{linear_classifier.1} parent=1 // loop_footer
      %s17 = sadd.s32 1, %s13
    $region7: #{linear_classifier.1} parent=1 // loop_footer_branch
      %12 = sbr.rel target = $region3
    $region8: #{linear_classifier.1} parent=1 // loop_exit
      _
    %516 = vsyncpa [#allocation4], 1
    %s517 = scalar_lea.sflag [#allocation4], 1
    %518 = vsyncpa %s517, 1
    %519 = vsyncpa [#allocation6], 1

</llo_original>
